<compile_context>
chip_gen: v6e
topology: v6e:2x2x1
jax: 0.10.0
libtpu: 0.0.40
codegen_flags: <defaults>
</compile_context>

<pallas_src>
import functools

import jax
import jax.numpy as jnp
from jax.experimental import pallas as pl
from jax.experimental.pallas import tpu as pltpu

# ---------------- model hyper-parameters (small, synthetic) ----------------
IN_FEATURES = 21
NUM_FEATURES = 100                    # hidden width of self.features
NUM_TREES = 16                        # out_channels of the forest
DEPTH = 3                             # tree depth
NUM_NODES = 2 ** DEPTH - 1            # internal (split) nodes per tree      -> 7
NUM_LEAVES = 2 ** DEPTH               # leaves per tree                      -> 8
NUM_SPLITS = NUM_NODES * NUM_TREES    # split-logit rows (node-major)        -> 112
NUM_LEAF_COLS = NUM_LEAVES * NUM_TREES  # stacked leaf-prob rows             -> 128
NUM_CLASSES = 3
BN_EPS = 1e-5


def _net_kernel(xt_ref, wc_ref, bd_ref, mt_ref, ba_ref, o_ref, *, num_trees, depth):
    """Fused forward pass on one batch tile, batch on the LANE axis.

    Shapes (all VMEM):
      xt_ref [21, Bt]        input, transposed (batch on lanes)
      wc_ref [112, 21]       combined (features @ BN-folded split) weight, node-major rows
      bd_ref [112, 1]        BN-folded split bias (column, broadcasts over lanes)
      mt_ref [3, 128]        (leaf ⊗ agg-weight) matrix, row index = leaf*T + tree
      ba_ref [3, 1]          agg bias (column)
      o_ref  [3, Bt]         transposed output (lane-dense store)
    """
    T = num_trees
    num_nodes = 2 ** depth - 1

    # ---- single fused matmul: Linear(21->100) + BN + split projection (MXU) ----
    logits = (jnp.dot(wc_ref[...], xt_ref[...], preferred_element_type=jnp.float32)
              + bd_ref[...])                                   # [112, Bt]
    gates = jax.nn.sigmoid(logits)                             # EUP (its own VLIW slot)

    # Per-node [T, Bt] gate tiles: sublane slices at 16-row (8-aligned) offsets,
    # extracted once; one (1 - g) per node.  Everything below is lane-dense VPU work.
    gL = [gates[n * T:(n + 1) * T, :] for n in range(num_nodes)]   # P(go left)
    gR = [1.0 - g for g in gL]                                     # P(go right)

    # Shared-prefix products down the tree; leaves emitted in leaf-index order
    # (DFS left-first == MSB-first bit order, 0 = left).  12 multiplies at depth 3.
    leaf_probs = []

    def descend(level, node, prob):
        if level == depth:
            leaf_probs.append(prob)
            return
        left = gL[node] if prob is None else prob * gL[node]
        right = gR[node] if prob is None else prob * gR[node]
        descend(level + 1, 2 * node + 1, left)
        descend(level + 1, 2 * node + 2, right)

    descend(0, 0, None)

    # ---- leaf aggregation + agg Linear as ONE K=128 MXU contraction ----
    # slab row index = leaf*T + tree, matching mt_ref's row layout.
    slab = jnp.concatenate(leaf_probs, axis=0)                 # [128, Bt]
    o_ref[...] = (jnp.dot(mt_ref[...], slab, preferred_element_type=jnp.float32)
                  + ba_ref[...])                               # lane-dense [3, Bt] store


def net_forward(x, params, *, batch_tile=2048):
    """Wrapper: fold BN + features + leaf/agg weights, then one fused pallas_call.

    B <= batch_tile : grid-free call (whole arrays in VMEM; best on v6e / small jobs).
    B  > batch_tile : lane-dense batch tiles on a "parallel" grid axis (>=2 steps,
                      so v7x can shard across both TensorCores).  Per-tile working set
                      is ~1.4 KB/row, so even the 2048-row default stays far below the
                      v5e 16 MiB scoped-VMEM default (no vmem_limit_bytes needed).
    """
    wf, wd, bd, leaf, wa, ba = params
    B = x.shape[0]
    hp = jax.lax.Precision.HIGHEST

    # ---- BatchNorm1d(affine=False) training-mode stats over the FULL batch (XLA) ----
    h = jnp.dot(x, wf, precision=hp)                                 # [B, 100]
    mean = jnp.mean(h, axis=0, keepdims=True)                        # [1, 100]
    var = jnp.mean(jnp.square(h - mean), axis=0, keepdims=True)      # biased var (torch BN)
    inv_std = jax.lax.rsqrt(var + BN_EPS)                            # [1, 100]

    # ---- fold features + BN into the split projection ----
    #   ((x@wf - mean) * inv_std) @ wd + bd
    #     == x @ (wf @ (inv_std*wd)) + (bd - (mean*inv_std) @ wd)
    wd_eff = wd * inv_std.reshape(NUM_FEATURES, 1)                   # [100, 112]
    wc_t = jnp.dot(wf, wd_eff, precision=hp).T                       # [112, 21]
    bd_eff = (bd - jnp.dot(mean * inv_std, wd, precision=hp)).reshape(NUM_SPLITS, 1)

    # ---- pre-combine leaves with the agg weight: M[l*T+t, c] = leaf[l,t]*wa[t,c] ----
    mt = (leaf[:, :, None] * wa[None, :, :]).reshape(NUM_LEAF_COLS, NUM_CLASSES).T  # [3, 128]
    ba_col = ba.reshape(NUM_CLASSES, 1)                              # [3, 1]

    xt = x.T                                                         # [21, B], batch on lanes
    kernel = functools.partial(_net_kernel, num_trees=NUM_TREES, depth=DEPTH)
    operands = (xt, wc_t, bd_eff, mt, ba_col)

    if B <= batch_tile:
        # Grid-free: total operand footprint is tiny; blocked specs would only add
        # double-buffer allocations and per-step pipeline overhead.
        vmem = pltpu.MemorySpace.VMEM
        out_t = pl.pallas_call(
            kernel,
            out_shape=jax.ShapeDtypeStruct((NUM_CLASSES, B), jnp.float32),
            in_specs=[pl.BlockSpec(memory_space=vmem)] * len(operands),
            out_specs=pl.BlockSpec(memory_space=vmem),
        )(*operands)
        return out_t.T

    # ---- batch-tiled path (BN already folded, so per-tile results are exact) ----
    batch_tile = max(128, (batch_tile // 128) * 128)   # lane-dense block widths
    n_tiles = pl.cdiv(B, batch_tile)                   # >= 2 here (B > batch_tile)
    Bp = n_tiles * batch_tile
    if Bp != B:
        xt = jnp.pad(xt, ((0, 0), (0, Bp - B)))        # remainder tile via zero-padding

    # Weight operands use constant index_maps; they stay block-resident across the
    # batch grid (double-buffering them costs only ~25 KB, so defaults are fine).
    out_t = pl.pallas_call(
        kernel,
        out_shape=jax.ShapeDtypeStruct((NUM_CLASSES, Bp), jnp.float32),
        grid=(n_tiles,),
        in_specs=[
            pl.BlockSpec((IN_FEATURES, batch_tile), lambda i: (0, i)),
            pl.BlockSpec((NUM_SPLITS, IN_FEATURES), lambda i: (0, 0)),
            pl.BlockSpec((NUM_SPLITS, 1), lambda i: (0, 0)),
            pl.BlockSpec((NUM_CLASSES, NUM_LEAF_COLS), lambda i: (0, 0)),
            pl.BlockSpec((NUM_CLASSES, 1), lambda i: (0, 0)),
        ],
        out_specs=pl.BlockSpec((NUM_CLASSES, batch_tile), lambda i: (0, i)),
        compiler_params=pltpu.CompilerParams(
            dimension_semantics=("parallel",)),        # shards tiles across TCs on v7x
    )(xt, wc_t, bd_eff, mt, ba_col)
    return out_t[:, :B].T


def init_params(key):
    """Deterministic synthetic parameters (shapes implied by Net.__init__)."""
    k_wf, k_wd, k_bd, k_leaf, k_wa, k_ba = jax.random.split(key, 6)
    # features.weight : [100, 21] -> stored transposed [21, 100]
    wf = jax.random.normal(k_wf, (IN_FEATURES, NUM_FEATURES), jnp.float32) * (1.0 / IN_FEATURES ** 0.5)
    # forest split weights: [T, NUM_NODES, 100] -> node-major flat [100, NUM_NODES*T]
    wd_full = jax.random.normal(k_wd, (NUM_TREES, NUM_NODES, NUM_FEATURES), jnp.float32) * (1.0 / NUM_FEATURES ** 0.5)
    wd = jnp.transpose(wd_full, (2, 1, 0)).reshape(NUM_FEATURES, NUM_SPLITS)
    bd = jax.random.normal(k_bd, (1, NUM_SPLITS), jnp.float32) * 0.1
    # leaf values: [NUM_LEAVES, T]
    leaf = jax.random.normal(k_leaf, (NUM_LEAVES, NUM_TREES), jnp.float32)
    # agg.weight : [3, T] -> stored transposed [T, 3]; agg.bias : [3]
    wa = jax.random.normal(k_wa, (NUM_TREES, NUM_CLASSES), jnp.float32) * (1.0 / NUM_TREES ** 0.5)
    ba = jax.random.normal(k_ba, (1, NUM_CLASSES), jnp.float32) * 0.1
    return wf, wd, bd, leaf, wa, ba


def reference_forward(x, params):
    """Pure-JAX reference of the same forward pass (unfolded BN, naive leaf walk)."""
    wf, wd, bd, leaf, wa, ba = params
    hp = jax.lax.Precision.HIGHEST
    h = jnp.dot(x, wf, precision=hp)
    mean = jnp.mean(h, axis=0, keepdims=True)
    var = jnp.mean(jnp.square(h - mean), axis=0, keepdims=True)
    h_bn = (h - mean) * jax.lax.rsqrt(var + BN_EPS)
    gates = jax.nn.sigmoid(jnp.dot(h_bn, wd, precision=hp) + bd)     # [B, NUM_NODES*T]
    gates = gates.reshape(x.shape[0], NUM_NODES, NUM_TREES)
    out = jnp.zeros((x.shape[0], NUM_TREES), jnp.float32)
    for l in range(NUM_LEAVES):
        prob = jnp.ones((x.shape[0], NUM_TREES), jnp.float32)
        node = 0
        for level in range(DEPTH):
            bit = (l >> (DEPTH - 1 - level)) & 1
            g = gates[:, node, :]
            prob = prob * (g if bit == 0 else 1.0 - g)
            node = 2 * node + 1 + bit
        out = out + prob * leaf[l]
    return jnp.dot(out, wa, precision=hp) + ba


if __name__ == "__main__":
    key = jax.random.PRNGKey(0)
    k_params, k_x_small, k_x_big = jax.random.split(key, 3)
    params = init_params(k_params)

    # Small batch: grid-free fused kernel (whole-array VMEM operands).
    x_small = jax.random.normal(k_x_small, (8, IN_FEATURES), jnp.float32)
    out_small = jax.block_until_ready(net_forward(x_small, params))
    ref_small = reference_forward(x_small, params)
    assert out_small.shape == (8, NUM_CLASSES)
    assert jnp.allclose(out_small, ref_small, atol=2e-4, rtol=2e-4), "small-batch mismatch"

    # Larger batch with a remainder: lane-dense batch-tiled "parallel" path.
    x_big = jax.random.normal(k_x_big, (300, IN_FEATURES), jnp.float32)
    out_big = jax.block_until_ready(net_forward(x_big, params, batch_tile=128))
    ref_big = reference_forward(x_big, params)
    assert out_big.shape == (300, NUM_CLASSES)
    assert jnp.allclose(out_big, ref_big, atol=2e-4, rtol=2e-4), "tiled-batch mismatch"

    print("KERNEL_OK")
</pallas_src>

<mosaic_0001>
module attributes {stable_mosaic.version = 11 : i64} {
  func.func @_net_kernel(%arg0: memref<21x8xf32, #tpu.memory_space<vmem>>, %arg1: memref<112x21xf32, #tpu.memory_space<vmem>>, %arg2: memref<112x1xf32, #tpu.memory_space<vmem>>, %arg3: memref<3x128xf32, #tpu.memory_space<vmem>>, %arg4: memref<3x1xf32, #tpu.memory_space<vmem>>, %arg5: memref<3x8xf32, #tpu.memory_space<vmem>>) attributes {dimension_semantics = [], scalar_prefetch = 0 : i64, scratch_operands = 0 : i64, tpu.core_type = #tpu.core_type<tc>} {
    %c0 = arith.constant 0 : index
    %c0_0 = arith.constant 0 : index
    %0 = vector.load %arg1[%c0, %c0_0] : memref<112x21xf32, #tpu.memory_space<vmem>>, vector<112x21xf32>
    %c0_1 = arith.constant 0 : index
    %c0_2 = arith.constant 0 : index
    %1 = vector.load %arg0[%c0_1, %c0_2] : memref<21x8xf32, #tpu.memory_space<vmem>>, vector<21x8xf32>
    %cst = arith.constant dense<0.000000e+00> : vector<112x8xf32>
    %2 = tpu.matmul %0, %1, %cst {dimension_numbers = #tpu.dot_dimension_numbers<[1], [0], [0], [1], [0, 0, 1, 1], [], []>} : vector<112x21xf32>, vector<21x8xf32>, vector<112x8xf32> -> vector<112x8xf32>
    %c0_3 = arith.constant 0 : index
    %c0_4 = arith.constant 0 : index
    %3 = vector.load %arg2[%c0_3, %c0_4] : memref<112x1xf32, #tpu.memory_space<vmem>>, vector<112x1xf32>
    %4 = vector.broadcast %3 : vector<112x1xf32> to vector<112x8xf32>
    %5 = arith.addf %2, %4 : vector<112x8xf32>
    %6 = arith.negf %5 : vector<112x8xf32>
    %7 = math.exp %6 : vector<112x8xf32>
    %cst_5 = arith.constant 1.000000e+00 : f32
    %8 = vector.broadcast %cst_5 : f32 to vector<112x8xf32>
    %9 = arith.addf %8, %7 : vector<112x8xf32>
    %10 = arith.divf %8, %9 : vector<112x8xf32>
    %11 = vector.extract_strided_slice %10 {offsets = [0, 0], sizes = [16, 8], strides = [1, 1]} : vector<112x8xf32> to vector<16x8xf32>
    %12 = vector.extract_strided_slice %10 {offsets = [16, 0], sizes = [16, 8], strides = [1, 1]} : vector<112x8xf32> to vector<16x8xf32>
    %13 = vector.extract_strided_slice %10 {offsets = [32, 0], sizes = [16, 8], strides = [1, 1]} : vector<112x8xf32> to vector<16x8xf32>
    %14 = vector.extract_strided_slice %10 {offsets = [48, 0], sizes = [16, 8], strides = [1, 1]} : vector<112x8xf32> to vector<16x8xf32>
    %15 = vector.extract_strided_slice %10 {offsets = [64, 0], sizes = [16, 8], strides = [1, 1]} : vector<112x8xf32> to vector<16x8xf32>
    %16 = vector.extract_strided_slice %10 {offsets = [80, 0], sizes = [16, 8], strides = [1, 1]} : vector<112x8xf32> to vector<16x8xf32>
    %17 = vector.extract_strided_slice %10 {offsets = [96, 0], sizes = [16, 8], strides = [1, 1]} : vector<112x8xf32> to vector<16x8xf32>
    %cst_6 = arith.constant 1.000000e+00 : f32
    %18 = vector.broadcast %cst_6 : f32 to vector<16x8xf32>
    %19 = arith.subf %18, %11 : vector<16x8xf32>
    %cst_7 = arith.constant 1.000000e+00 : f32
    %20 = vector.broadcast %cst_7 : f32 to vector<16x8xf32>
    %21 = arith.subf %20, %12 : vector<16x8xf32>
    %cst_8 = arith.constant 1.000000e+00 : f32
    %22 = vector.broadcast %cst_8 : f32 to vector<16x8xf32>
    %23 = arith.subf %22, %13 : vector<16x8xf32>
    %cst_9 = arith.constant 1.000000e+00 : f32
    %24 = vector.broadcast %cst_9 : f32 to vector<16x8xf32>
    %25 = arith.subf %24, %14 : vector<16x8xf32>
    %cst_10 = arith.constant 1.000000e+00 : f32
    %26 = vector.broadcast %cst_10 : f32 to vector<16x8xf32>
    %27 = arith.subf %26, %15 : vector<16x8xf32>
    %cst_11 = arith.constant 1.000000e+00 : f32
    %28 = vector.broadcast %cst_11 : f32 to vector<16x8xf32>
    %29 = arith.subf %28, %16 : vector<16x8xf32>
    %cst_12 = arith.constant 1.000000e+00 : f32
    %30 = vector.broadcast %cst_12 : f32 to vector<16x8xf32>
    %31 = arith.subf %30, %17 : vector<16x8xf32>
    %32 = arith.mulf %11, %12 : vector<16x8xf32>
    %33 = arith.mulf %11, %21 : vector<16x8xf32>
    %34 = arith.mulf %32, %14 : vector<16x8xf32>
    %35 = arith.mulf %32, %25 : vector<16x8xf32>
    %36 = arith.mulf %33, %15 : vector<16x8xf32>
    %37 = arith.mulf %33, %27 : vector<16x8xf32>
    %38 = arith.mulf %19, %13 : vector<16x8xf32>
    %39 = arith.mulf %19, %23 : vector<16x8xf32>
    %40 = arith.mulf %38, %16 : vector<16x8xf32>
    %41 = arith.mulf %38, %29 : vector<16x8xf32>
    %42 = arith.mulf %39, %17 : vector<16x8xf32>
    %43 = arith.mulf %39, %31 : vector<16x8xf32>
    %44 = tpu.concatenate %34, %35, %36, %37, %40, %41, %42, %43 in 0 : vector<16x8xf32>, vector<16x8xf32>, vector<16x8xf32>, vector<16x8xf32>, vector<16x8xf32>, vector<16x8xf32>, vector<16x8xf32>, vector<16x8xf32> -> vector<128x8xf32>
    %c0_13 = arith.constant 0 : index
    %c0_14 = arith.constant 0 : index
    %45 = vector.load %arg3[%c0_13, %c0_14] : memref<3x128xf32, #tpu.memory_space<vmem>>, vector<3x128xf32>
    %cst_15 = arith.constant dense<0.000000e+00> : vector<3x8xf32>
    %46 = tpu.matmul %45, %44, %cst_15 {dimension_numbers = #tpu.dot_dimension_numbers<[1], [0], [0], [1], [0, 0, 1, 1], [], []>} : vector<3x128xf32>, vector<128x8xf32>, vector<3x8xf32> -> vector<3x8xf32>
    %c0_16 = arith.constant 0 : index
    %c0_17 = arith.constant 0 : index
    %47 = vector.load %arg4[%c0_16, %c0_17] : memref<3x1xf32, #tpu.memory_space<vmem>>, vector<3x1xf32>
    %48 = vector.broadcast %47 : vector<3x1xf32> to vector<3x8xf32>
    %49 = arith.addf %46, %48 : vector<3x8xf32>
    %c0_18 = arith.constant 0 : index
    %c0_19 = arith.constant 0 : index
    %50 = vector.load %arg5[%c0_18, %c0_19] : memref<3x8xf32, #tpu.memory_space<vmem>>, vector<3x8xf32>
    tpu.vector_store %arg5[%c0_18, %c0_19], %49 {strides = array<i32>} : memref<3x8xf32, #tpu.memory_space<vmem>>, vector<3x8xf32>,
    return
  }
}

</mosaic_0001>

<llo_original>
// kernel: tpu_custom_call.1
$region0: #{tpu_custom_call.1}
  #allocation0 [shape = 'u32[]', space=smem, size = 0x4, offset = 0x4, fixed_abs, tag = 'smem constant byte address 0x4 - core index']
  #allocation1 [shape = 'u32[144,128]{1,0:T(1,128)}', space=vmem, size = 0x12000, scoped, tag = 'internal scratch']
  %s0 = inlined_call_operand.vmem [shape: f32[21,8], index: 0, kind: input, shape index: {}]
  %s1 = inlined_call_operand.vmem [shape: f32[112,21], index: 1, kind: input, shape index: {}]
  %s2 = inlined_call_operand.vmem [shape: f32[112,1], index: 2, kind: input, shape index: {}]
  %s3 = inlined_call_operand.vmem [shape: f32[3,128], index: 3, kind: input, shape index: {}]
  %s4 = inlined_call_operand.vmem [shape: f32[3,1], index: 4, kind: input, shape index: {}]
  %s5 = inlined_call_operand.hbm [shape: f32[3,8], index: 5, kind: output, shape index: {}]
  %s6 = sld [smem:[#allocation0]]
  $region30: #{tpu_custom_call.1} parent=0
    _
  %s8 = ssub.s32 1, %s6
  %s9 = scalar_select 0, %s8, %s6
  $region1: #{tpu_custom_call.1} parent=0
    #allocation2 [shape = 'u8[2048]{0}', space=vmem, size = 0x800, scoped, tag = 'output window, operand 0, single buffered']
    #allocation3 [shape = 's32[1]{0}', space=sflag, size = 0x4, scoped, tag = 'scoped memory for tpu_custom_call.1']
    %10 = vsyncpa [#allocation3], 0
    // Predicated region
    $region2: #{tpu_custom_call.1} parent=1 // pred_check
      _
    $region3: #{tpu_custom_call.1} parent=1 // pred_check_branch
      %12 = sbr.rel (0) target = $region5
    $region4: #{tpu_custom_call.1} parent=1 // pred_region
      _
    $region5: #{tpu_custom_call.1} parent=1 // pred_fallthru
      _
    // Predicated region
    $region6: #{tpu_custom_call.1} parent=1 // pred_check
      _
    $region7: #{tpu_custom_call.1} parent=1 // pred_check_branch
      %14 = sbr.rel (0) target = $region9
    $region8: #{tpu_custom_call.1} parent=1 // pred_region
      _
    $region9: #{tpu_custom_call.1} parent=1 // pred_fallthru
      _
    // Predicated region
    $region10: #{tpu_custom_call.1} parent=1 // pred_check
      _
    $region11: #{tpu_custom_call.1} parent=1 // pred_check_branch
      %16 = sbr.rel (0) target = $region13
    $region12: #{tpu_custom_call.1} parent=1 // pred_region
      _
    $region13: #{tpu_custom_call.1} parent=1 // pred_fallthru
      _
    // Predicated region
    $region14: #{tpu_custom_call.1} parent=1 // pred_check
      _
    $region15: #{tpu_custom_call.1} parent=1 // pred_check_branch
      %18 = sbr.rel (0) target = $region17
    $region16: #{tpu_custom_call.1} parent=1 // pred_region
      _
    $region17: #{tpu_custom_call.1} parent=1 // pred_fallthru
      _
    // Predicated region
    $region18: #{tpu_custom_call.1} parent=1 // pred_check
      _
    $region19: #{tpu_custom_call.1} parent=1 // pred_check_branch
      %20 = sbr.rel (0) target = $region21
    $region20: #{tpu_custom_call.1} parent=1 // pred_region
      _
    $region21: #{tpu_custom_call.1} parent=1 // pred_fallthru
      _
    %v21 = vld [vmem:[%s1] sm:$0xff]
    %v22 = vld [vmem:[%s1 + $0x8] sm:$0xff]
    %v23 = vld [vmem:[%s1 + $0x10] sm:$0xff]
    %v24 = vld [vmem:[%s1 + $0x18] sm:$0xff]
    %v25 = vld [vmem:[%s1 + $0x20] sm:$0xff]
    %v26 = vld [vmem:[%s1 + $0x28] sm:$0xff]
    %v27 = vld [vmem:[%s1 + $0x30] sm:$0xff]
    %v28 = vld [vmem:[%s1 + $0x38] sm:$0xff]
    %v29 = vld [vmem:[%s1 + $0x40] sm:$0xff]
    %v30 = vld [vmem:[%s1 + $0x48] sm:$0xff]
    %v31 = vld [vmem:[%s1 + $0x50] sm:$0xff]
    %v32 = vld [vmem:[%s1 + $0x58] sm:$0xff]
    %v33 = vld [vmem:[%s1 + $0x60] sm:$0xff]
    %v34 = vld [vmem:[%s1 + $0x68] sm:$0xff]
    %v35 = vld [vmem:[%s0] sm:$0xff]
    %v36 = vld [vmem:[%s0 + $0x8] sm:$0xff]
    %v37 = vld [vmem:[%s0 + $0x10] sm:$0x1f]
    %v38 = vld [vmem:[%s2] sm:$0xff]
    %v39 = vld [vmem:[%s2 + $0x8] sm:$0xff]
    %v40 = vld [vmem:[%s2 + $0x10] sm:$0xff]
    %v41 = vld [vmem:[%s2 + $0x18] sm:$0xff]
    %v42 = vld [vmem:[%s2 + $0x20] sm:$0xff]
    %v43 = vld [vmem:[%s2 + $0x28] sm:$0xff]
    %v44 = vld [vmem:[%s2 + $0x30] sm:$0xff]
    %v45 = vld [vmem:[%s2 + $0x38] sm:$0xff]
    %v46 = vld [vmem:[%s2 + $0x40] sm:$0xff]
    %v47 = vld [vmem:[%s2 + $0x48] sm:$0xff]
    %v48 = vld [vmem:[%s2 + $0x50] sm:$0xff]
    %v49 = vld [vmem:[%s2 + $0x58] sm:$0xff]
    %v50 = vld [vmem:[%s2 + $0x60] sm:$0xff]
    %v51 = vld [vmem:[%s2 + $0x68] sm:$0xff]
    %53 = vset.pattern.permute.xlu0 0
    %54 = vperm.xlu0 %53, %v38
    %v55 = vpop.permute.xlu0 %54
    %58 = vset.pattern.permute.xlu0 0
    %59 = vperm.xlu0 %58, %v39
    %v60 = vpop.permute.xlu0 %59
    %63 = vset.pattern.permute.xlu0 0
    %64 = vperm.xlu0 %63, %v40
    %v65 = vpop.permute.xlu0 %64
    %68 = vset.pattern.permute.xlu0 0
    %69 = vperm.xlu0 %68, %v41
    %v70 = vpop.permute.xlu0 %69
    %73 = vset.pattern.permute.xlu0 0
    %74 = vperm.xlu0 %73, %v42
    %v75 = vpop.permute.xlu0 %74
    %78 = vset.pattern.permute.xlu0 0
    %79 = vperm.xlu0 %78, %v43
    %v80 = vpop.permute.xlu0 %79
    %83 = vset.pattern.permute.xlu0 0
    %84 = vperm.xlu0 %83, %v44
    %v85 = vpop.permute.xlu0 %84
    %88 = vset.pattern.permute.xlu0 0
    %89 = vperm.xlu0 %88, %v45
    %v90 = vpop.permute.xlu0 %89
    %93 = vset.pattern.permute.xlu0 0
    %94 = vperm.xlu0 %93, %v46
    %v95 = vpop.permute.xlu0 %94
    %98 = vset.pattern.permute.xlu0 0
    %99 = vperm.xlu0 %98, %v47
    %v100 = vpop.permute.xlu0 %99
    %103 = vset.pattern.permute.xlu0 0
    %104 = vperm.xlu0 %103, %v48
    %v105 = vpop.permute.xlu0 %104
    %108 = vset.pattern.permute.xlu0 0
    %109 = vperm.xlu0 %108, %v49
    %v110 = vpop.permute.xlu0 %109
    %113 = vset.pattern.permute.xlu0 0
    %114 = vperm.xlu0 %113, %v50
    %v115 = vpop.permute.xlu0 %114
    %118 = vset.pattern.permute.xlu0 0
    %119 = vperm.xlu0 %118, %v51
    %v120 = vpop.permute.xlu0 %119
    %vm122 = vcmask 171008
    %v124 = vsel %vm122, %v21, 0
    %v127 = vsel %vm122, %v22, 0
    %v130 = vsel %vm122, %v23, 0
    %v133 = vsel %vm122, %v24, 0
    %v136 = vsel %vm122, %v25, 0
    %v139 = vsel %vm122, %v26, 0
    %v142 = vsel %vm122, %v27, 0
    %v145 = vsel %vm122, %v28, 0
    %v148 = vsel %vm122, %v29, 0
    %v151 = vsel %vm122, %v30, 0
    %v154 = vsel %vm122, %v31, 0
    %v157 = vsel %vm122, %v32, 0
    %v160 = vsel %vm122, %v33, 0
    %v163 = vsel %vm122, %v34, 0
    %vm165 = vcmask 1044480
    %v167 = vsel %vm165, %v37, 0
    %169 = vmatprep.subr.mxu0 0.0
    %170 = vmatpush1.msra.mxu0 0.0
    %171 = vmatprep.subr.mxu0 0.0
    %172 = vmatpush1.msra.mxu0 0.0
    %173 = vmatprep.subr.mxu0 0.0
    %174 = vmatpush1.msra.mxu0 0.0
    %175 = vmatprep.subr.mxu0 0.0
    %176 = vmatpush1.msra.mxu0 0.0
    %177 = vmatprep.subr.mxu0 0.0
    %178 = vmatpush1.msra.mxu0 0.0
    %179 = vmatprep.subr.mxu0 0.0
    %180 = vmatpush1.msra.mxu0 0.0
    %181 = vmatprep.subr.mxu0 0.0
    %182 = vmatpush1.msra.mxu0 0.0
    %183 = vmatprep.subr.mxu0 0.0
    %184 = vmatpush1.msra.mxu0 0.0
    %185 = vmatprep.subr.mxu0 0.0
    %186 = vmatpush1.msra.mxu0 0.0
    %187 = vmatprep.subr.mxu0 0.0
    %188 = vmatpush1.msra.mxu0 0.0
    %189 = vmatprep.subr.mxu0 0.0
    %190 = vmatpush1.msra.mxu0 0.0
    %191 = vmatprep.subr.mxu0 0.0
    %192 = vmatpush1.msra.mxu0 0.0
    %193 = vmatprep.subr.mxu0 0.0
    %194 = vmatpush1.msra.mxu0 0.0
    %195 = vmatprep.subr.mxu0 0.0
    %196 = vmatpush1.msra.mxu0 %v167
    %197 = vmatprep.subr.mxu0 0.0
    %198 = vmatpush1.msra.mxu0 %v36
    %199 = vmatprep.subr.mxu0 0.0
    %200 = vmatpush1.msra.mxu0 %v35
    %201 = vmatprep.subr.mxu0 0.0
    %202 = vmatpush2.msra.mxu0 0.0
    %203 = vmatprep.subr.mxu0 0.0
    %204 = vmatpush2.msra.mxu0 0.0
    %205 = vmatprep.subr.mxu0 0.0
    %206 = vmatpush2.msra.mxu0 0.0
    %207 = vmatprep.subr.mxu0 0.0
    %208 = vmatpush2.msra.mxu0 0.0
    %209 = vmatprep.subr.mxu0 0.0
    %210 = vmatpush2.msra.mxu0 0.0
    %211 = vmatprep.subr.mxu0 0.0
    %212 = vmatpush2.msra.mxu0 0.0
    %213 = vmatprep.subr.mxu0 0.0
    %214 = vmatpush2.msra.mxu0 0.0
    %215 = vmatprep.subr.mxu0 0.0
    %216 = vmatpush2.msra.mxu0 0.0
    %217 = vmatprep.subr.mxu0 0.0
    %218 = vmatpush2.msra.mxu0 0.0
    %219 = vmatprep.subr.mxu0 0.0
    %220 = vmatpush2.msra.mxu0 0.0
    %221 = vmatprep.subr.mxu0 0.0
    %222 = vmatpush2.msra.mxu0 0.0
    %223 = vmatprep.subr.mxu0 0.0
    %224 = vmatpush2.msra.mxu0 0.0
    %225 = vmatprep.subr.mxu0 0.0
    %226 = vmatpush2.msra.mxu0 0.0
    %227 = vmatprep.subr.mxu0 0.0
    %228 = vmatpush2.msra.mxu0 0.0
    %229 = vmatprep.subr.mxu0 0.0
    %230 = vmatpush2.msra.mxu0 0.0
    %231 = vmatprep.subr.mxu0 0.0
    %232 = vmatpush2.msra.mxu0 0.0
    %233 = vmatprep.mubr.f32.mxu0 0.0
    %234 = vmatmul.mubr.f32.gmra.mxu0 %v124
    %v235 = vpop.f32.mrf.mxu0
    %v236 = vadd.f32 %v55, %v235
    %v237 = vpop.f32.mrf.mxu0
    %238 = vmatprep.mubr.f32.mxu0 0.0
    %239 = vmatmul.mubr.f32.gmra.mxu0 %v127
    %v240 = vpop.f32.mrf.mxu0
    %v241 = vadd.f32 %v60, %v240
    %v242 = vpop.f32.mrf.mxu0
    %243 = vmatprep.mubr.f32.mxu0 0.0
    %244 = vmatmul.mubr.f32.gmra.mxu0 %v130
    %v245 = vpop.f32.mrf.mxu0
    %v246 = vadd.f32 %v65, %v245
    %v247 = vpop.f32.mrf.mxu0
    %248 = vmatprep.mubr.f32.mxu0 0.0
    %249 = vmatmul.mubr.f32.gmra.mxu0 %v133
    %v250 = vpop.f32.mrf.mxu0
    %v251 = vadd.f32 %v70, %v250
    %v252 = vpop.f32.mrf.mxu0
    %253 = vmatprep.mubr.f32.mxu0 0.0
    %254 = vmatmul.mubr.f32.gmra.mxu0 %v136
    %v255 = vpop.f32.mrf.mxu0
    %v256 = vadd.f32 %v75, %v255
    %v257 = vpop.f32.mrf.mxu0
    %258 = vmatprep.mubr.f32.mxu0 0.0
    %259 = vmatmul.mubr.f32.gmra.mxu0 %v139
    %v260 = vpop.f32.mrf.mxu0
    %v261 = vadd.f32 %v80, %v260
    %v262 = vpop.f32.mrf.mxu0
    %263 = vmatprep.mubr.f32.mxu0 0.0
    %264 = vmatmul.mubr.f32.gmra.mxu0 %v142
    %v265 = vpop.f32.mrf.mxu0
    %v266 = vadd.f32 %v85, %v265
    %v267 = vpop.f32.mrf.mxu0
    %268 = vmatprep.mubr.f32.mxu0 0.0
    %269 = vmatmul.mubr.f32.gmra.mxu0 %v145
    %v270 = vpop.f32.mrf.mxu0
    %v271 = vadd.f32 %v90, %v270
    %v272 = vpop.f32.mrf.mxu0
    %273 = vmatprep.mubr.f32.mxu0 0.0
    %274 = vmatmul.mubr.f32.gmra.mxu0 %v148
    %v275 = vpop.f32.mrf.mxu0
    %v276 = vadd.f32 %v95, %v275
    %v277 = vpop.f32.mrf.mxu0
    %278 = vmatprep.mubr.f32.mxu0 0.0
    %279 = vmatmul.mubr.f32.gmra.mxu0 %v151
    %v280 = vpop.f32.mrf.mxu0
    %v281 = vadd.f32 %v100, %v280
    %v282 = vpop.f32.mrf.mxu0
    %283 = vmatprep.mubr.f32.mxu0 0.0
    %284 = vmatmul.mubr.f32.gmra.mxu0 %v154
    %v285 = vpop.f32.mrf.mxu0
    %v286 = vadd.f32 %v105, %v285
    %v287 = vpop.f32.mrf.mxu0
    %288 = vmatprep.mubr.f32.mxu0 0.0
    %289 = vmatmul.mubr.f32.gmra.mxu0 %v157
    %v290 = vpop.f32.mrf.mxu0
    %v291 = vadd.f32 %v110, %v290
    %v292 = vpop.f32.mrf.mxu0
    %293 = vmatprep.mubr.f32.mxu0 0.0
    %294 = vmatmul.mubr.f32.gmra.mxu0 %v160
    %v295 = vpop.f32.mrf.mxu0
    %v296 = vadd.f32 %v115, %v295
    %v297 = vpop.f32.mrf.mxu0
    %298 = vmatprep.mubr.f32.mxu0 0.0
    %299 = vmatmul.mubr.f32.gmra.mxu0 %v163
    %v300 = vpop.f32.mrf.mxu0
    %v301 = vadd.f32 %v120, %v300
    %v302 = vpop.f32.mrf.mxu0
    %303 = vdwg.mxu0
    %v304 = vxor.u32 %v236, 2147483648
    %v305 = vxor.u32 %v241, 2147483648
    %v306 = vxor.u32 %v246, 2147483648
    %v307 = vxor.u32 %v251, 2147483648
    %v308 = vxor.u32 %v256, 2147483648
    %v309 = vxor.u32 %v261, 2147483648
    %v310 = vxor.u32 %v266, 2147483648
    %v311 = vxor.u32 %v271, 2147483648
    %v312 = vxor.u32 %v276, 2147483648
    %v313 = vxor.u32 %v281, 2147483648
    %v314 = vxor.u32 %v286, 2147483648
    %v315 = vxor.u32 %v291, 2147483648
    %v316 = vxor.u32 %v296, 2147483648
    %v317 = vxor.u32 %v301, 2147483648
    %v318 = vmul.f32 %v304, 1.442695
    %v319 = vpow.pop %v318
    %v320 = vmul.f32 %v305, 1.442695
    %v321 = vpow.pop %v320
    %v322 = vmul.f32 %v306, 1.442695
    %v323 = vpow.pop %v322
    %v324 = vmul.f32 %v307, 1.442695
    %v325 = vpow.pop %v324
    %v326 = vmul.f32 %v308, 1.442695
    %v327 = vpow.pop %v326
    %v328 = vmul.f32 %v309, 1.442695
    %v329 = vpow.pop %v328
    %v330 = vmul.f32 %v310, 1.442695
    %v331 = vpow.pop %v330
    %v332 = vmul.f32 %v311, 1.442695
    %v333 = vpow.pop %v332
    %v334 = vmul.f32 %v312, 1.442695
    %v335 = vpow.pop %v334
    %v336 = vmul.f32 %v313, 1.442695
    %v337 = vpow.pop %v336
    %v338 = vmul.f32 %v314, 1.442695
    %v339 = vpow.pop %v338
    %v340 = vmul.f32 %v315, 1.442695
    %v341 = vpow.pop %v340
    %v342 = vmul.f32 %v316, 1.442695
    %v343 = vpow.pop %v342
    %v344 = vmul.f32 %v317, 1.442695
    %v345 = vpow.pop %v344
    %v346 = vadd.f32 %v319, 1.0
    %v347 = vadd.f32 %v321, 1.0
    %v348 = vadd.f32 %v323, 1.0
    %v349 = vadd.f32 %v325, 1.0
    %v350 = vadd.f32 %v327, 1.0
    %v351 = vadd.f32 %v329, 1.0
    %v352 = vadd.f32 %v331, 1.0
    %v353 = vadd.f32 %v333, 1.0
    %v354 = vadd.f32 %v335, 1.0
    %v355 = vadd.f32 %v337, 1.0
    %v356 = vadd.f32 %v339, 1.0
    %v357 = vadd.f32 %v341, 1.0
    %v358 = vadd.f32 %v343, 1.0
    %v359 = vadd.f32 %v345, 1.0
    %v360 = vrcp.pop %v346
    %v361 = vmul.f32 1.0, %v360
    %v362 = vrcp.pop %v347
    %v363 = vmul.f32 1.0, %v362
    %v364 = vrcp.pop %v348
    %v365 = vmul.f32 1.0, %v364
    %v366 = vrcp.pop %v349
    %v367 = vmul.f32 1.0, %v366
    %v368 = vrcp.pop %v350
    %v369 = vmul.f32 1.0, %v368
    %v370 = vrcp.pop %v351
    %v371 = vmul.f32 1.0, %v370
    %v372 = vrcp.pop %v352
    %v373 = vmul.f32 1.0, %v372
    %v374 = vrcp.pop %v353
    %v375 = vmul.f32 1.0, %v374
    %v376 = vrcp.pop %v354
    %v377 = vmul.f32 1.0, %v376
    %v378 = vrcp.pop %v355
    %v379 = vmul.f32 1.0, %v378
    %v380 = vrcp.pop %v356
    %v381 = vmul.f32 1.0, %v380
    %v382 = vrcp.pop %v357
    %v383 = vmul.f32 1.0, %v382
    %v384 = vrcp.pop %v358
    %v385 = vmul.f32 1.0, %v384
    %v386 = vrcp.pop %v359
    %v387 = vmul.f32 1.0, %v386
    %v388 = vsub.f32 1.0, %v361
    %v389 = vsub.f32 1.0, %v363
    %v390 = vsub.f32 1.0, %v365
    %v391 = vsub.f32 1.0, %v367
    %v392 = vsub.f32 1.0, %v369
    %v393 = vsub.f32 1.0, %v371
    %v394 = vsub.f32 1.0, %v373
    %v395 = vsub.f32 1.0, %v375
    %v396 = vsub.f32 1.0, %v377
    %v397 = vsub.f32 1.0, %v379
    %v398 = vsub.f32 1.0, %v381
    %v399 = vsub.f32 1.0, %v383
    %v400 = vsub.f32 1.0, %v385
    %v401 = vsub.f32 1.0, %v387
    %v402 = vmul.f32 %v361, %v365
    %v403 = vmul.f32 %v363, %v367
    %v404 = vmul.f32 %v361, %v390
    %v405 = vmul.f32 %v363, %v391
    %v406 = vmul.f32 %v402, %v373
    %v407 = vmul.f32 %v403, %v375
    %v408 = vmul.f32 %v402, %v394
    %v409 = vmul.f32 %v403, %v395
    %v410 = vmul.f32 %v404, %v377
    %v411 = vmul.f32 %v405, %v379
    %v412 = vmul.f32 %v404, %v396
    %v413 = vmul.f32 %v405, %v397
    %v414 = vmul.f32 %v388, %v369
    %v415 = vmul.f32 %v389, %v371
    %v416 = vmul.f32 %v388, %v392
    %v417 = vmul.f32 %v389, %v393
    %v418 = vmul.f32 %v414, %v381
    %v419 = vmul.f32 %v415, %v383
    %v420 = vmul.f32 %v414, %v398
    %v421 = vmul.f32 %v415, %v399
    %v422 = vmul.f32 %v416, %v385
    %v423 = vmul.f32 %v417, %v387
    %v424 = vmul.f32 %v416, %v400
    %v425 = vmul.f32 %v417, %v401
    %v426 = vld [vmem:[%s3] sm:$0x7]
    %v427 = vld [vmem:[%s4] sm:$0x7]
    %429 = vset.pattern.permute.xlu0 0
    %430 = vperm.xlu0 %429, %v427
    %v431 = vpop.permute.xlu0 %430
    %433 = vmatprep.subr.mxu0 0.0
    %434 = vmatpush1.msra.mxu0 %v425
    %435 = vmatprep.subr.mxu0 0.0
    %436 = vmatpush1.msra.mxu0 %v424
    %437 = vmatprep.subr.mxu0 0.0
    %438 = vmatpush1.msra.mxu0 %v423
    %439 = vmatprep.subr.mxu0 0.0
    %440 = vmatpush1.msra.mxu0 %v422
    %441 = vmatprep.subr.mxu0 0.0
    %442 = vmatpush1.msra.mxu0 %v421
    %443 = vmatprep.subr.mxu0 0.0
    %444 = vmatpush1.msra.mxu0 %v420
    %445 = vmatprep.subr.mxu0 0.0
    %446 = vmatpush1.msra.mxu0 %v419
    %447 = vmatprep.subr.mxu0 0.0
    %448 = vmatpush1.msra.mxu0 %v418
    %449 = vmatprep.subr.mxu0 0.0
    %450 = vmatpush1.msra.mxu0 %v413
    %451 = vmatprep.subr.mxu0 0.0
    %452 = vmatpush1.msra.mxu0 %v412
    %453 = vmatprep.subr.mxu0 0.0
    %454 = vmatpush1.msra.mxu0 %v411
    %455 = vmatprep.subr.mxu0 0.0
    %456 = vmatpush1.msra.mxu0 %v410
    %457 = vmatprep.subr.mxu0 0.0
    %458 = vmatpush1.msra.mxu0 %v409
    %459 = vmatprep.subr.mxu0 0.0
    %460 = vmatpush1.msra.mxu0 %v408
    %461 = vmatprep.subr.mxu0 0.0
    %462 = vmatpush1.msra.mxu0 %v407
    %463 = vmatprep.subr.mxu0 0.0
    %464 = vmatpush1.msra.mxu0 %v406
    %465 = vmatprep.subr.mxu0 0.0
    %466 = vmatpush2.msra.mxu0 0.0
    %467 = vmatprep.subr.mxu0 0.0
    %468 = vmatpush2.msra.mxu0 0.0
    %469 = vmatprep.subr.mxu0 0.0
    %470 = vmatpush2.msra.mxu0 0.0
    %471 = vmatprep.subr.mxu0 0.0
    %472 = vmatpush2.msra.mxu0 0.0
    %473 = vmatprep.subr.mxu0 0.0
    %474 = vmatpush2.msra.mxu0 0.0
    %475 = vmatprep.subr.mxu0 0.0
    %476 = vmatpush2.msra.mxu0 0.0
    %477 = vmatprep.subr.mxu0 0.0
    %478 = vmatpush2.msra.mxu0 0.0
    %479 = vmatprep.subr.mxu0 0.0
    %480 = vmatpush2.msra.mxu0 0.0
    %481 = vmatprep.subr.mxu0 0.0
    %482 = vmatpush2.msra.mxu0 0.0
    %483 = vmatprep.subr.mxu0 0.0
    %484 = vmatpush2.msra.mxu0 0.0
    %485 = vmatprep.subr.mxu0 0.0
    %486 = vmatpush2.msra.mxu0 0.0
    %487 = vmatprep.subr.mxu0 0.0
    %488 = vmatpush2.msra.mxu0 0.0
    %489 = vmatprep.subr.mxu0 0.0
    %490 = vmatpush2.msra.mxu0 0.0
    %491 = vmatprep.subr.mxu0 0.0
    %492 = vmatpush2.msra.mxu0 0.0
    %493 = vmatprep.subr.mxu0 0.0
    %494 = vmatpush2.msra.mxu0 0.0
    %495 = vmatprep.subr.mxu0 0.0
    %496 = vmatpush2.msra.mxu0 0.0
    %497 = vmatprep.mubr.f32.mxu0 0.0
    %498 = vmatmul.mubr.f32.gmra.mxu0 %v426
    %v499 = vpop.f32.mrf.mxu0
    %v500 = vadd.f32 %v431, %v499
    %v501 = vpop.f32.mrf.mxu0
    %502 = vdwg.mxu0
    %vm503 = vcmask 59392
    %504 = vst.msk [vmem:[#allocation2] sm:$0x7] %vm503, %v500
    // Predicated region
    $region22: #{tpu_custom_call.1} parent=1 // pred_check
      _
    $region23: #{tpu_custom_call.1} parent=1 // pred_check_branch
      %506 = sbr.rel (0) target = $region25
    $region24: #{tpu_custom_call.1} parent=1 // pred_region
      %s508 = ssub.s32 64, 64
      %509 = vsyncadd [#allocation3], %s508
      %s511 = sshll.u32 [#allocation2], 4
      %s512 = int_to_ptr.vmem [resolvable:$true] %s511
      %514 = dma.vmem_to_hbm [thread:$0]  %s512, 64, %s5, [#allocation3]
    $region25: #{tpu_custom_call.1} parent=1 // pred_fallthru
      _
    // Predicated region
    $region26: #{tpu_custom_call.1} parent=1 // pred_check
      _
    $region27: #{tpu_custom_call.1} parent=1 // pred_check_branch
      %516 = sbr.rel (0) target = $region29
    $region28: #{tpu_custom_call.1} parent=1 // pred_region
      %517 = dma.done [#allocation3], 64
    $region29: #{tpu_custom_call.1} parent=1 // pred_fallthru
      _
    %518 = vsyncpa [#allocation3], 1

</llo_original>
